<compile_context>
chip_gen: v6e
topology: v6e:2x2x1
jax: 0.10.0
libtpu: 0.0.40
codegen_flags: <defaults>
</compile_context>

<pallas_src>
import numpy as np
import jax
import jax.numpy as jnp
from jax import lax
from jax.experimental import pallas as pl
from jax.experimental.pallas import tpu as pltpu

F32 = jnp.float32
_VMEM = pl.BlockSpec(memory_space=pltpu.MemorySpace.VMEM)


# ----------------------------------------------------------------------------
# Fused TCN kernel: stack of causal dilated residual blocks on a (C, N*L) slab
# ----------------------------------------------------------------------------
def make_tcn_kernel(level_specs, N, L):
    """level_specs: list of dicts with keys 'dilation', 'has_down'."""
    NL = N * L
    L_is_pow2 = (L & (L - 1)) == 0

    def kernel(*refs):
        x_ref = refs[0]            # (Cin_padded, N*L)
        out_ref = refs[-1]         # (C_last, N*L)
        h = x_ref[...]

        # time index within each length-L sequence, per lane
        lane = lax.broadcasted_iota(jnp.int32, (1, NL), 1)
        lane_t = jnp.bitwise_and(lane, L - 1) if L_is_pow2 else lane % L

        idx = 1
        for lvl in level_specs:
            d = lvl["dilation"]
            npar = 6 if lvl["has_down"] else 4
            p = refs[idx:idx + npar]
            idx += npar
            w1, b1, w2, b2 = (r[...] for r in p[:4])

            kill = lane_t < d      # x[t-d] falls before the sequence start

            def causal_shift(a, kill=kill, d=d):
                # a[:, n*L+t] -> a[:, n*L+t-d], zero for t < d (per-sequence causal)
                return jnp.where(kill, 0.0, pltpu.roll(a, shift=d, axis=1))

            # conv1 (kernel_size=2, causal): both taps fused into one MXU matmul
            o1 = jnp.maximum(
                jnp.dot(w1, jnp.concatenate([causal_shift(h), h], axis=0),
                        preferred_element_type=F32) + b1, 0.0)
            # TODO(synk): dropout1/dropout2 are inference-mode identity here.
            # conv2
            o2 = jnp.maximum(
                jnp.dot(w2, jnp.concatenate([causal_shift(o1), o1], axis=0),
                        preferred_element_type=F32) + b2, 0.0)

            # residual (1x1 downsample conv when channel counts differ)
            if lvl["has_down"]:
                wd, bd = p[4][...], p[5][...]
                res = jnp.dot(wd, h, preferred_element_type=F32) + bd
            else:
                res = h
            h = jnp.maximum(o2 + res, 0.0)

        out_ref[...] = h

    return kernel


# ----------------------------------------------------------------------------
# Wrapper: layout / weight packing around the single pallas_call
# ----------------------------------------------------------------------------
def _round_up(v, m):
    return -(-v // m) * m


def temporal_conv_net_pallas(x, params):
    """x: (N, Cin, L) — same NCL convention as the PyTorch module."""
    N, Cin, L = x.shape
    NL = N * L
    tcn = params["tcn"]
    C_last = tcn[-1]["w1"].shape[0]

    # channel-major lane-dense slab; pad level-0 input channels to sublane group
    cin_pad0 = _round_up(Cin, 8)
    h2d = jnp.transpose(x, (1, 0, 2)).reshape(Cin, NL)
    if cin_pad0 != Cin:
        h2d = jnp.pad(h2d, ((0, cin_pad0 - Cin), (0, 0)))

    flat_args = []
    level_specs = []
    for li, lvl in enumerate(tcn):
        cin = lvl["w1"].shape[1]
        cin_p = cin_pad0 if li == 0 else cin

        def pad_in(w, cin_p=cin_p):
            if w.shape[1] == cin_p:
                return w
            return jnp.pad(w, ((0, 0), (0, cin_p - w.shape[1])))

        # fused tap weights: [tap on x(t-d) | tap on x(t)]
        w1f = jnp.concatenate([pad_in(lvl["w1"][:, :, 0]),
                               pad_in(lvl["w1"][:, :, 1])], axis=1)
        w2f = jnp.concatenate([lvl["w2"][:, :, 0], lvl["w2"][:, :, 1]], axis=1)
        flat_args += [w1f, lvl["b1"][:, None], w2f, lvl["b2"][:, None]]
        if lvl["has_down"]:
            flat_args += [pad_in(lvl["wd"]), lvl["bd"][:, None]]
        level_specs.append(dict(dilation=lvl["dilation"], has_down=lvl["has_down"]))

    n_in = 1 + len(flat_args)
    H2d = pl.pallas_call(
        make_tcn_kernel(level_specs, N, L),
        out_shape=jax.ShapeDtypeStruct((C_last, NL), F32),
        in_specs=[_VMEM] * n_in,
        out_specs=_VMEM,
    )(h2d, *flat_args)

    # back to the PyTorch output layout (Batch, output_channel, seq_len)
    return jnp.transpose(H2d.reshape(C_last, N, L), (1, 0, 2))


# ----------------------------------------------------------------------------
# Deterministic synthetic parameters (weight_norm folded directly)
# ----------------------------------------------------------------------------
def init_params(key, num_inputs, num_channels, kernel_size=2):
    keys = iter(jax.random.split(key, 64))
    nrm = lambda shape, s: s * jax.random.normal(next(keys), shape, F32)

    tcn = []
    cin = num_inputs
    for i, cout in enumerate(num_channels):
        lvl = dict(
            w1=nrm((cout, cin, kernel_size), 0.01), b1=nrm((cout,), 0.1),
            w2=nrm((cout, cout, kernel_size), 0.01), b2=nrm((cout,), 0.1),
            dilation=2 ** i, has_down=(cin != cout),
        )
        if lvl["has_down"]:
            lvl["wd"] = nrm((cout, cin), 0.01)
            lvl["bd"] = nrm((cout,), 0.1)
        tcn.append(lvl)
        cin = cout
    return dict(tcn=tcn)


# ----------------------------------------------------------------------------
# Pure-JAX reference (mirrors the PyTorch forward exactly) for validation
# ----------------------------------------------------------------------------
def tcn_reference(x, params):
    HP = lax.Precision.HIGHEST
    h = x
    for lvl in params["tcn"]:
        d = lvl["dilation"]

        def conv(hh, w, b):
            hs = jnp.concatenate(
                [jnp.zeros_like(hh[:, :, :d]), hh[:, :, :-d]], axis=2)
            return (jnp.einsum('oc,ncl->nol', w[:, :, 0], hs, precision=HP)
                    + jnp.einsum('oc,ncl->nol', w[:, :, 1], hh, precision=HP)
                    + b[None, :, None])

        o1 = jax.nn.relu(conv(h, lvl["w1"], lvl["b1"]))
        o2 = jax.nn.relu(conv(o1, lvl["w2"], lvl["b2"]))
        if lvl["has_down"]:
            res = (jnp.einsum('oc,ncl->nol', lvl["wd"], h, precision=HP)
                   + lvl["bd"][None, :, None])
        else:
            res = h
        h = jax.nn.relu(o2 + res)
    return h


if __name__ == "__main__":
    N, L = 8, 16                 # batch (sequences), seq_len
    num_inputs = 4               # input channels
    num_channels = [16, 16]      # two TemporalBlocks, dilations 1 and 2

    key = jax.random.PRNGKey(0)
    kp, kx = jax.random.split(key)
    params = init_params(kp, num_inputs, num_channels)
    x = jax.random.normal(kx, (N, num_inputs, L), F32)

    out = temporal_conv_net_pallas(x, params)
    out = jax.block_until_ready(out)

    ref = tcn_reference(x, params)
    assert out.shape == (N, num_channels[-1], L), out.shape
    if not np.allclose(np.asarray(out), np.asarray(ref), rtol=1e-2, atol=1e-3):
        err = float(np.max(np.abs(np.asarray(out) - np.asarray(ref))))
        raise AssertionError(f"mismatch vs reference, max abs err = {err}")
    print("KERNEL_OK")
</pallas_src>

<mosaic_0001>
module attributes {stable_mosaic.version = 11 : i64} {
  func.func @kernel(%arg0: memref<8x128xf32, #tpu.memory_space<vmem>>, %arg1: memref<16x16xf32, #tpu.memory_space<vmem>>, %arg2: memref<16x1xf32, #tpu.memory_space<vmem>>, %arg3: memref<16x32xf32, #tpu.memory_space<vmem>>, %arg4: memref<16x1xf32, #tpu.memory_space<vmem>>, %arg5: memref<16x8xf32, #tpu.memory_space<vmem>>, %arg6: memref<16x1xf32, #tpu.memory_space<vmem>>, %arg7: memref<16x32xf32, #tpu.memory_space<vmem>>, %arg8: memref<16x1xf32, #tpu.memory_space<vmem>>, %arg9: memref<16x32xf32, #tpu.memory_space<vmem>>, %arg10: memref<16x1xf32, #tpu.memory_space<vmem>>, %arg11: memref<16x128xf32, #tpu.memory_space<vmem>>) attributes {dimension_semantics = [], scalar_prefetch = 0 : i64, scratch_operands = 0 : i64, tpu.core_type = #tpu.core_type<tc>} {
    %c0 = arith.constant 0 : index
    %c0_0 = arith.constant 0 : index
    %0 = vector.load %arg0[%c0, %c0_0] : memref<8x128xf32, #tpu.memory_space<vmem>>, vector<8x128xf32>
    %1 = tpu.iota {dimensions = array<i32: 1>} : vector<1x128xi32>
    %c15_i32 = arith.constant 15 : i32
    %2 = vector.broadcast %c15_i32 : i32 to vector<1x128xi32>
    %3 = arith.andi %1, %2 : vector<1x128xi32>
    %c0_1 = arith.constant 0 : index
    %c0_2 = arith.constant 0 : index
    %4 = vector.load %arg1[%c0_1, %c0_2] : memref<16x16xf32, #tpu.memory_space<vmem>>, vector<16x16xf32>
    %c0_3 = arith.constant 0 : index
    %c0_4 = arith.constant 0 : index
    %5 = vector.load %arg2[%c0_3, %c0_4] : memref<16x1xf32, #tpu.memory_space<vmem>>, vector<16x1xf32>
    %c0_5 = arith.constant 0 : index
    %c0_6 = arith.constant 0 : index
    %6 = vector.load %arg3[%c0_5, %c0_6] : memref<16x32xf32, #tpu.memory_space<vmem>>, vector<16x32xf32>
    %c0_7 = arith.constant 0 : index
    %c0_8 = arith.constant 0 : index
    %7 = vector.load %arg4[%c0_7, %c0_8] : memref<16x1xf32, #tpu.memory_space<vmem>>, vector<16x1xf32>
    %c1_i32 = arith.constant 1 : i32
    %8 = vector.broadcast %c1_i32 : i32 to vector<1x128xi32>
    %9 = arith.cmpi slt, %3, %8 : vector<1x128xi32>
    %c1_i32_9 = arith.constant 1 : i32
    %10 = tpu.dynamic_rotate %0 by %c1_i32_9 dim 1 : vector<8x128xf32>, i32 -> vector<8x128xf32>
    %cst = arith.constant 0.000000e+00 : f32
    %11 = vector.shape_cast %9 : vector<1x128xi1> to vector<1x128xi1>
    %12 = vector.broadcast %11 : vector<1x128xi1> to vector<8x128xi1>
    %13 = vector.broadcast %cst : f32 to vector<8x128xf32>
    %14 = arith.select %12, %13, %10 : vector<8x128xi1>, vector<8x128xf32>
    %15 = tpu.concatenate %14, %0 in 0 : vector<8x128xf32>, vector<8x128xf32> -> vector<16x128xf32>
    %cst_10 = arith.constant dense<0.000000e+00> : vector<16x128xf32>
    %16 = tpu.matmul %4, %15, %cst_10 {dimension_numbers = #tpu.dot_dimension_numbers<[1], [0], [0], [1], [0, 0, 1, 1], [], []>} : vector<16x16xf32>, vector<16x128xf32>, vector<16x128xf32> -> vector<16x128xf32>
    %17 = vector.broadcast %5 : vector<16x1xf32> to vector<16x128xf32>
    %18 = arith.addf %16, %17 : vector<16x128xf32>
    %cst_11 = arith.constant 0.000000e+00 : f32
    %19 = vector.broadcast %cst_11 : f32 to vector<16x128xf32>
    %20 = arith.maximumf %18, %19 : vector<16x128xf32>
    %c1_i32_12 = arith.constant 1 : i32
    %21 = tpu.dynamic_rotate %20 by %c1_i32_12 dim 1 : vector<16x128xf32>, i32 -> vector<16x128xf32>
    %cst_13 = arith.constant 0.000000e+00 : f32
    %22 = vector.shape_cast %9 : vector<1x128xi1> to vector<1x128xi1>
    %23 = vector.broadcast %22 : vector<1x128xi1> to vector<16x128xi1>
    %24 = vector.broadcast %cst_13 : f32 to vector<16x128xf32>
    %25 = arith.select %23, %24, %21 : vector<16x128xi1>, vector<16x128xf32>
    %26 = tpu.concatenate %25, %20 in 0 : vector<16x128xf32>, vector<16x128xf32> -> vector<32x128xf32>
    %cst_14 = arith.constant dense<0.000000e+00> : vector<16x128xf32>
    %27 = tpu.matmul %6, %26, %cst_14 {dimension_numbers = #tpu.dot_dimension_numbers<[1], [0], [0], [1], [0, 0, 1, 1], [], []>} : vector<16x32xf32>, vector<32x128xf32>, vector<16x128xf32> -> vector<16x128xf32>
    %28 = vector.broadcast %7 : vector<16x1xf32> to vector<16x128xf32>
    %29 = arith.addf %27, %28 : vector<16x128xf32>
    %cst_15 = arith.constant 0.000000e+00 : f32
    %30 = vector.broadcast %cst_15 : f32 to vector<16x128xf32>
    %31 = arith.maximumf %29, %30 : vector<16x128xf32>
    %c0_16 = arith.constant 0 : index
    %c0_17 = arith.constant 0 : index
    %32 = vector.load %arg5[%c0_16, %c0_17] : memref<16x8xf32, #tpu.memory_space<vmem>>, vector<16x8xf32>
    %c0_18 = arith.constant 0 : index
    %c0_19 = arith.constant 0 : index
    %33 = vector.load %arg6[%c0_18, %c0_19] : memref<16x1xf32, #tpu.memory_space<vmem>>, vector<16x1xf32>
    %cst_20 = arith.constant dense<0.000000e+00> : vector<16x128xf32>
    %34 = tpu.matmul %32, %0, %cst_20 {dimension_numbers = #tpu.dot_dimension_numbers<[1], [0], [0], [1], [0, 0, 1, 1], [], []>} : vector<16x8xf32>, vector<8x128xf32>, vector<16x128xf32> -> vector<16x128xf32>
    %35 = vector.broadcast %33 : vector<16x1xf32> to vector<16x128xf32>
    %36 = arith.addf %34, %35 : vector<16x128xf32>
    %37 = arith.addf %31, %36 : vector<16x128xf32>
    %cst_21 = arith.constant 0.000000e+00 : f32
    %38 = vector.broadcast %cst_21 : f32 to vector<16x128xf32>
    %39 = arith.maximumf %37, %38 : vector<16x128xf32>
    %c0_22 = arith.constant 0 : index
    %c0_23 = arith.constant 0 : index
    %40 = vector.load %arg7[%c0_22, %c0_23] : memref<16x32xf32, #tpu.memory_space<vmem>>, vector<16x32xf32>
    %c0_24 = arith.constant 0 : index
    %c0_25 = arith.constant 0 : index
    %41 = vector.load %arg8[%c0_24, %c0_25] : memref<16x1xf32, #tpu.memory_space<vmem>>, vector<16x1xf32>
    %c0_26 = arith.constant 0 : index
    %c0_27 = arith.constant 0 : index
    %42 = vector.load %arg9[%c0_26, %c0_27] : memref<16x32xf32, #tpu.memory_space<vmem>>, vector<16x32xf32>
    %c0_28 = arith.constant 0 : index
    %c0_29 = arith.constant 0 : index
    %43 = vector.load %arg10[%c0_28, %c0_29] : memref<16x1xf32, #tpu.memory_space<vmem>>, vector<16x1xf32>
    %c2_i32 = arith.constant 2 : i32
    %44 = vector.broadcast %c2_i32 : i32 to vector<1x128xi32>
    %45 = arith.cmpi slt, %3, %44 : vector<1x128xi32>
    %c2_i32_30 = arith.constant 2 : i32
    %46 = tpu.dynamic_rotate %39 by %c2_i32_30 dim 1 : vector<16x128xf32>, i32 -> vector<16x128xf32>
    %cst_31 = arith.constant 0.000000e+00 : f32
    %47 = vector.shape_cast %45 : vector<1x128xi1> to vector<1x128xi1>
    %48 = vector.broadcast %47 : vector<1x128xi1> to vector<16x128xi1>
    %49 = vector.broadcast %cst_31 : f32 to vector<16x128xf32>
    %50 = arith.select %48, %49, %46 : vector<16x128xi1>, vector<16x128xf32>
    %51 = tpu.concatenate %50, %39 in 0 : vector<16x128xf32>, vector<16x128xf32> -> vector<32x128xf32>
    %cst_32 = arith.constant dense<0.000000e+00> : vector<16x128xf32>
    %52 = tpu.matmul %40, %51, %cst_32 {dimension_numbers = #tpu.dot_dimension_numbers<[1], [0], [0], [1], [0, 0, 1, 1], [], []>} : vector<16x32xf32>, vector<32x128xf32>, vector<16x128xf32> -> vector<16x128xf32>
    %53 = vector.broadcast %41 : vector<16x1xf32> to vector<16x128xf32>
    %54 = arith.addf %52, %53 : vector<16x128xf32>
    %cst_33 = arith.constant 0.000000e+00 : f32
    %55 = vector.broadcast %cst_33 : f32 to vector<16x128xf32>
    %56 = arith.maximumf %54, %55 : vector<16x128xf32>
    %c2_i32_34 = arith.constant 2 : i32
    %57 = tpu.dynamic_rotate %56 by %c2_i32_34 dim 1 : vector<16x128xf32>, i32 -> vector<16x128xf32>
    %cst_35 = arith.constant 0.000000e+00 : f32
    %58 = vector.shape_cast %45 : vector<1x128xi1> to vector<1x128xi1>
    %59 = vector.broadcast %58 : vector<1x128xi1> to vector<16x128xi1>
    %60 = vector.broadcast %cst_35 : f32 to vector<16x128xf32>
    %61 = arith.select %59, %60, %57 : vector<16x128xi1>, vector<16x128xf32>
    %62 = tpu.concatenate %61, %56 in 0 : vector<16x128xf32>, vector<16x128xf32> -> vector<32x128xf32>
    %cst_36 = arith.constant dense<0.000000e+00> : vector<16x128xf32>
    %63 = tpu.matmul %42, %62, %cst_36 {dimension_numbers = #tpu.dot_dimension_numbers<[1], [0], [0], [1], [0, 0, 1, 1], [], []>} : vector<16x32xf32>, vector<32x128xf32>, vector<16x128xf32> -> vector<16x128xf32>
    %64 = vector.broadcast %43 : vector<16x1xf32> to vector<16x128xf32>
    %65 = arith.addf %63, %64 : vector<16x128xf32>
    %cst_37 = arith.constant 0.000000e+00 : f32
    %66 = vector.broadcast %cst_37 : f32 to vector<16x128xf32>
    %67 = arith.maximumf %65, %66 : vector<16x128xf32>
    %68 = arith.addf %67, %39 : vector<16x128xf32>
    %cst_38 = arith.constant 0.000000e+00 : f32
    %69 = vector.broadcast %cst_38 : f32 to vector<16x128xf32>
    %70 = arith.maximumf %68, %69 : vector<16x128xf32>
    %c0_39 = arith.constant 0 : index
    %c0_40 = arith.constant 0 : index
    %71 = vector.load %arg11[%c0_39, %c0_40] : memref<16x128xf32, #tpu.memory_space<vmem>>, vector<16x128xf32>
    tpu.vector_store %arg11[%c0_39, %c0_40], %70 {strides = array<i32>} : memref<16x128xf32, #tpu.memory_space<vmem>>, vector<16x128xf32>,
    return
  }
}

</mosaic_0001>

<llo_original>
// kernel: tpu_custom_call.1
$region0: #{tpu_custom_call.1}
  #allocation0 [shape = 'u32[]', space=smem, size = 0x4, offset = 0x4, fixed_abs, tag = 'smem constant byte address 0x4 - core index']
  #allocation1 [shape = 'u32[144,128]{1,0:T(1,128)}', space=vmem, size = 0x12000, scoped, tag = 'internal scratch']
  %s0 = inlined_call_operand.vmem [shape: f32[8,128], index: 0, kind: input, shape index: {}]
  %s1 = inlined_call_operand.vmem [shape: f32[16,16], index: 1, kind: input, shape index: {}]
  %s2 = inlined_call_operand.vmem [shape: f32[16,1], index: 2, kind: input, shape index: {}]
  %s3 = inlined_call_operand.vmem [shape: f32[16,32], index: 3, kind: input, shape index: {}]
  %s4 = inlined_call_operand.vmem [shape: f32[16,1], index: 4, kind: input, shape index: {}]
  %s5 = inlined_call_operand.vmem [shape: f32[16,8], index: 5, kind: input, shape index: {}]
  %s6 = inlined_call_operand.vmem [shape: f32[16,1], index: 6, kind: input, shape index: {}]
  %s7 = inlined_call_operand.vmem [shape: f32[16,32], index: 7, kind: input, shape index: {}]
  %s8 = inlined_call_operand.vmem [shape: f32[16,1], index: 8, kind: input, shape index: {}]
  %s9 = inlined_call_operand.vmem [shape: f32[16,32], index: 9, kind: input, shape index: {}]
  %s10 = inlined_call_operand.vmem [shape: f32[16,1], index: 10, kind: input, shape index: {}]
  %s11 = inlined_call_operand.hbm [shape: f32[16,128], index: 11, kind: output, shape index: {}]
  %s12 = sld [smem:[#allocation0]]
  $region54: #{tpu_custom_call.1} parent=0
    _
  %s14 = ssub.s32 1, %s12
  %s15 = scalar_select 0, %s14, %s12
  $region1: #{tpu_custom_call.1} parent=0
    #allocation2 [shape = 'u8[8192]{0}', space=vmem, size = 0x2000, scoped, tag = 'output window, operand 0, single buffered']
    #allocation3 [shape = 's32[1]{0}', space=sflag, size = 0x4, scoped, tag = 'scoped memory for tpu_custom_call.1']
    %16 = vsyncpa [#allocation3], 0
    // Predicated region
    $region2: #{tpu_custom_call.1} parent=1 // pred_check
      _
    $region3: #{tpu_custom_call.1} parent=1 // pred_check_branch
      %18 = sbr.rel (0) target = $region5
    $region4: #{tpu_custom_call.1} parent=1 // pred_region
      _
    $region5: #{tpu_custom_call.1} parent=1 // pred_fallthru
      _
    // Predicated region
    $region6: #{tpu_custom_call.1} parent=1 // pred_check
      _
    $region7: #{tpu_custom_call.1} parent=1 // pred_check_branch
      %20 = sbr.rel (0) target = $region9
    $region8: #{tpu_custom_call.1} parent=1 // pred_region
      _
    $region9: #{tpu_custom_call.1} parent=1 // pred_fallthru
      _
    // Predicated region
    $region10: #{tpu_custom_call.1} parent=1 // pred_check
      _
    $region11: #{tpu_custom_call.1} parent=1 // pred_check_branch
      %22 = sbr.rel (0) target = $region13
    $region12: #{tpu_custom_call.1} parent=1 // pred_region
      _
    $region13: #{tpu_custom_call.1} parent=1 // pred_fallthru
      _
    // Predicated region
    $region14: #{tpu_custom_call.1} parent=1 // pred_check
      _
    $region15: #{tpu_custom_call.1} parent=1 // pred_check_branch
      %24 = sbr.rel (0) target = $region17
    $region16: #{tpu_custom_call.1} parent=1 // pred_region
      _
    $region17: #{tpu_custom_call.1} parent=1 // pred_fallthru
      _
    // Predicated region
    $region18: #{tpu_custom_call.1} parent=1 // pred_check
      _
    $region19: #{tpu_custom_call.1} parent=1 // pred_check_branch
      %26 = sbr.rel (0) target = $region21
    $region20: #{tpu_custom_call.1} parent=1 // pred_region
      _
    $region21: #{tpu_custom_call.1} parent=1 // pred_fallthru
      _
    // Predicated region
    $region22: #{tpu_custom_call.1} parent=1 // pred_check
      _
    $region23: #{tpu_custom_call.1} parent=1 // pred_check_branch
      %28 = sbr.rel (0) target = $region25
    $region24: #{tpu_custom_call.1} parent=1 // pred_region
      _
    $region25: #{tpu_custom_call.1} parent=1 // pred_fallthru
      _
    // Predicated region
    $region26: #{tpu_custom_call.1} parent=1 // pred_check
      _
    $region27: #{tpu_custom_call.1} parent=1 // pred_check_branch
      %30 = sbr.rel (0) target = $region29
    $region28: #{tpu_custom_call.1} parent=1 // pred_region
      _
    $region29: #{tpu_custom_call.1} parent=1 // pred_fallthru
      _
    // Predicated region
    $region30: #{tpu_custom_call.1} parent=1 // pred_check
      _
    $region31: #{tpu_custom_call.1} parent=1 // pred_check_branch
      %32 = sbr.rel (0) target = $region33
    $region32: #{tpu_custom_call.1} parent=1 // pred_region
      _
    $region33: #{tpu_custom_call.1} parent=1 // pred_fallthru
      _
    // Predicated region
    $region34: #{tpu_custom_call.1} parent=1 // pred_check
      _
    $region35: #{tpu_custom_call.1} parent=1 // pred_check_branch
      %34 = sbr.rel (0) target = $region37
    $region36: #{tpu_custom_call.1} parent=1 // pred_region
      _
    $region37: #{tpu_custom_call.1} parent=1 // pred_fallthru
      _
    // Predicated region
    $region38: #{tpu_custom_call.1} parent=1 // pred_check
      _
    $region39: #{tpu_custom_call.1} parent=1 // pred_check_branch
      %36 = sbr.rel (0) target = $region41
    $region40: #{tpu_custom_call.1} parent=1 // pred_region
      _
    $region41: #{tpu_custom_call.1} parent=1 // pred_fallthru
      _
    // Predicated region
    $region42: #{tpu_custom_call.1} parent=1 // pred_check
      _
    $region43: #{tpu_custom_call.1} parent=1 // pred_check_branch
      %38 = sbr.rel (0) target = $region45
    $region44: #{tpu_custom_call.1} parent=1 // pred_region
      _
    $region45: #{tpu_custom_call.1} parent=1 // pred_fallthru
      _
    %v39 = vld [vmem:[%s0] sm:$0xff]
    %v40 = vlaneseq
    %v41 = vand.u32 %v40, 127
    %v42 = vand.u32 %v41, 15
    %v43 = vld [vmem:[%s1] sm:$0xff]
    %v44 = vld [vmem:[%s1 + $0x8] sm:$0xff]
    %v45 = vld [vmem:[%s2] sm:$0xff]
    %v46 = vld [vmem:[%s2 + $0x8] sm:$0xff]
    %v47 = vld [vmem:[%s3] sm:$0xff]
    %v48 = vld [vmem:[%s3 + $0x8] sm:$0xff]
    %v49 = vld [vmem:[%s4] sm:$0xff]
    %v50 = vld [vmem:[%s4 + $0x8] sm:$0xff]
    %vm51 = vcmp.lt.s32.totalorder %v42, 1
    %52 = vrot.lane.b32.xlu0 %v39, 1
    %v53 = vpop.permute.xlu0 %52
    %v54 = vsel %vm51, 1, 0
    %vm55 = vcmp.eq.s32.totalorder %v54, 1
    %v56 = vsel %vm55, 0.0, %v53
    %58 = vset.pattern.permute.xlu0 0
    %59 = vperm.xlu0 %58, %v45
    %v60 = vpop.permute.xlu0 %59
    %63 = vset.pattern.permute.xlu0 0
    %64 = vperm.xlu0 %63, %v46
    %v65 = vpop.permute.xlu0 %64
    %vm67 = vcmask 130048
    %v69 = vsel %vm67, %v43, 0
    %v72 = vsel %vm67, %v44, 0
    %74 = vmatprep.subr.mxu0 0.0
    %75 = vmatpush1.msra.mxu0 0.0
    %76 = vmatprep.subr.mxu0 0.0
    %77 = vmatpush1.msra.mxu0 0.0
    %78 = vmatprep.subr.mxu0 0.0
    %79 = vmatpush1.msra.mxu0 0.0
    %80 = vmatprep.subr.mxu0 0.0
    %81 = vmatpush1.msra.mxu0 0.0
    %82 = vmatprep.subr.mxu0 0.0
    %83 = vmatpush1.msra.mxu0 0.0
    %84 = vmatprep.subr.mxu0 0.0
    %85 = vmatpush1.msra.mxu0 0.0
    %86 = vmatprep.subr.mxu0 0.0
    %87 = vmatpush1.msra.mxu0 0.0
    %88 = vmatprep.subr.mxu0 0.0
    %89 = vmatpush1.msra.mxu0 0.0
    %90 = vmatprep.subr.mxu0 0.0
    %91 = vmatpush1.msra.mxu0 0.0
    %92 = vmatprep.subr.mxu0 0.0
    %93 = vmatpush1.msra.mxu0 0.0
    %94 = vmatprep.subr.mxu0 0.0
    %95 = vmatpush1.msra.mxu0 0.0
    %96 = vmatprep.subr.mxu0 0.0
    %97 = vmatpush1.msra.mxu0 0.0
    %98 = vmatprep.subr.mxu0 0.0
    %99 = vmatpush1.msra.mxu0 0.0
    %100 = vmatprep.subr.mxu0 0.0
    %101 = vmatpush1.msra.mxu0 0.0
    %102 = vmatprep.subr.mxu0 0.0
    %103 = vmatpush1.msra.mxu0 %v39
    %104 = vmatprep.subr.mxu0 0.0
    %105 = vmatpush1.msra.mxu0 %v56
    %106 = vmatprep.subr.mxu0 0.0
    %107 = vmatpush2.msra.mxu0 0.0
    %108 = vmatprep.subr.mxu0 0.0
    %109 = vmatpush2.msra.mxu0 0.0
    %110 = vmatprep.subr.mxu0 0.0
    %111 = vmatpush2.msra.mxu0 0.0
    %112 = vmatprep.subr.mxu0 0.0
    %113 = vmatpush2.msra.mxu0 0.0
    %114 = vmatprep.subr.mxu0 0.0
    %115 = vmatpush2.msra.mxu0 0.0
    %116 = vmatprep.subr.mxu0 0.0
    %117 = vmatpush2.msra.mxu0 0.0
    %118 = vmatprep.subr.mxu0 0.0
    %119 = vmatpush2.msra.mxu0 0.0
    %120 = vmatprep.subr.mxu0 0.0
    %121 = vmatpush2.msra.mxu0 0.0
    %122 = vmatprep.subr.mxu0 0.0
    %123 = vmatpush2.msra.mxu0 0.0
    %124 = vmatprep.subr.mxu0 0.0
    %125 = vmatpush2.msra.mxu0 0.0
    %126 = vmatprep.subr.mxu0 0.0
    %127 = vmatpush2.msra.mxu0 0.0
    %128 = vmatprep.subr.mxu0 0.0
    %129 = vmatpush2.msra.mxu0 0.0
    %130 = vmatprep.subr.mxu0 0.0
    %131 = vmatpush2.msra.mxu0 0.0
    %132 = vmatprep.subr.mxu0 0.0
    %133 = vmatpush2.msra.mxu0 0.0
    %134 = vmatprep.subr.mxu0 0.0
    %135 = vmatpush2.msra.mxu0 0.0
    %136 = vmatprep.subr.mxu0 0.0
    %137 = vmatpush2.msra.mxu0 0.0
    %138 = vmatprep.mubr.f32.mxu0 0.0
    %139 = vmatmul.mubr.f32.gmra.mxu0 %v69
    %v140 = vpop.f32.mrf.mxu0
    %v141 = vadd.f32 %v60, %v140
    %v142 = vpop.f32.mrf.mxu0
    %143 = vmatprep.mubr.f32.mxu0 0.0
    %144 = vmatmul.mubr.f32.gmra.mxu0 %v72
    %v145 = vpop.f32.mrf.mxu0
    %v146 = vadd.f32 %v65, %v145
    %v147 = vpop.f32.mrf.mxu0
    %148 = vdwg.mxu0
    %v149 = vmax.f32 %v141, 0.0
    %v150 = vmax.f32 %v146, 0.0
    %151 = vrot.lane.b32.xlu0 %v149, 1
    %v152 = vpop.permute.xlu0 %151
    %153 = vrot.lane.b32.xlu0 %v150, 1
    %v154 = vpop.permute.xlu0 %153
    %v155 = vsel %vm55, 0.0, %v152
    %v156 = vsel %vm55, 0.0, %v154
    %158 = vset.pattern.permute.xlu0 0
    %159 = vperm.xlu0 %158, %v49
    %v160 = vpop.permute.xlu0 %159
    %163 = vset.pattern.permute.xlu0 0
    %164 = vperm.xlu0 %163, %v50
    %v165 = vpop.permute.xlu0 %164
    %vm167 = vcmask 261120
    %v169 = vsel %vm167, %v47, 0
    %v172 = vsel %vm167, %v48, 0
    %174 = vmatprep.subr.mxu0 0.0
    %175 = vmatpush1.msra.mxu0 0.0
    %176 = vmatprep.subr.mxu0 0.0
    %177 = vmatpush1.msra.mxu0 0.0
    %178 = vmatprep.subr.mxu0 0.0
    %179 = vmatpush1.msra.mxu0 0.0
    %180 = vmatprep.subr.mxu0 0.0
    %181 = vmatpush1.msra.mxu0 0.0
    %182 = vmatprep.subr.mxu0 0.0
    %183 = vmatpush1.msra.mxu0 0.0
    %184 = vmatprep.subr.mxu0 0.0
    %185 = vmatpush1.msra.mxu0 0.0
    %186 = vmatprep.subr.mxu0 0.0
    %187 = vmatpush1.msra.mxu0 0.0
    %188 = vmatprep.subr.mxu0 0.0
    %189 = vmatpush1.msra.mxu0 0.0
    %190 = vmatprep.subr.mxu0 0.0
    %191 = vmatpush1.msra.mxu0 0.0
    %192 = vmatprep.subr.mxu0 0.0
    %193 = vmatpush1.msra.mxu0 0.0
    %194 = vmatprep.subr.mxu0 0.0
    %195 = vmatpush1.msra.mxu0 0.0
    %196 = vmatprep.subr.mxu0 0.0
    %197 = vmatpush1.msra.mxu0 0.0
    %198 = vmatprep.subr.mxu0 0.0
    %199 = vmatpush1.msra.mxu0 %v150
    %200 = vmatprep.subr.mxu0 0.0
    %201 = vmatpush1.msra.mxu0 %v149
    %202 = vmatprep.subr.mxu0 0.0
    %203 = vmatpush1.msra.mxu0 %v156
    %204 = vmatprep.subr.mxu0 0.0
    %205 = vmatpush1.msra.mxu0 %v155
    %206 = vmatprep.subr.mxu0 0.0
    %207 = vmatpush2.msra.mxu0 0.0
    %208 = vmatprep.subr.mxu0 0.0
    %209 = vmatpush2.msra.mxu0 0.0
    %210 = vmatprep.subr.mxu0 0.0
    %211 = vmatpush2.msra.mxu0 0.0
    %212 = vmatprep.subr.mxu0 0.0
    %213 = vmatpush2.msra.mxu0 0.0
    %214 = vmatprep.subr.mxu0 0.0
    %215 = vmatpush2.msra.mxu0 0.0
    %216 = vmatprep.subr.mxu0 0.0
    %217 = vmatpush2.msra.mxu0 0.0
    %218 = vmatprep.subr.mxu0 0.0
    %219 = vmatpush2.msra.mxu0 0.0
    %220 = vmatprep.subr.mxu0 0.0
    %221 = vmatpush2.msra.mxu0 0.0
    %222 = vmatprep.subr.mxu0 0.0
    %223 = vmatpush2.msra.mxu0 0.0
    %224 = vmatprep.subr.mxu0 0.0
    %225 = vmatpush2.msra.mxu0 0.0
    %226 = vmatprep.subr.mxu0 0.0
    %227 = vmatpush2.msra.mxu0 0.0
    %228 = vmatprep.subr.mxu0 0.0
    %229 = vmatpush2.msra.mxu0 0.0
    %230 = vmatprep.subr.mxu0 0.0
    %231 = vmatpush2.msra.mxu0 0.0
    %232 = vmatprep.subr.mxu0 0.0
    %233 = vmatpush2.msra.mxu0 0.0
    %234 = vmatprep.subr.mxu0 0.0
    %235 = vmatpush2.msra.mxu0 0.0
    %236 = vmatprep.subr.mxu0 0.0
    %237 = vmatpush2.msra.mxu0 0.0
    %238 = vmatprep.mubr.f32.mxu0 0.0
    %239 = vmatmul.mubr.f32.gmra.mxu0 %v169
    %v240 = vpop.f32.mrf.mxu0
    %v241 = vadd.f32 %v160, %v240
    %v242 = vpop.f32.mrf.mxu0
    %243 = vmatprep.mubr.f32.mxu0 0.0
    %244 = vmatmul.mubr.f32.gmra.mxu0 %v172
    %v245 = vpop.f32.mrf.mxu0
    %v246 = vadd.f32 %v165, %v245
    %v247 = vpop.f32.mrf.mxu0
    %248 = vdwg.mxu0
    %v249 = vmax.f32 %v241, 0.0
    %v250 = vmax.f32 %v246, 0.0
    %v251 = vld [vmem:[%s5] sm:$0xff]
    %v252 = vld [vmem:[%s5 + $0x8] sm:$0xff]
    %v253 = vld [vmem:[%s6] sm:$0xff]
    %v254 = vld [vmem:[%s6 + $0x8] sm:$0xff]
    %256 = vset.pattern.permute.xlu0 0
    %257 = vperm.xlu0 %256, %v253
    %v258 = vpop.permute.xlu0 %257
    %261 = vset.pattern.permute.xlu0 0
    %262 = vperm.xlu0 %261, %v254
    %v263 = vpop.permute.xlu0 %262
    %vm265 = vcmask 64512
    %v267 = vsel %vm265, %v251, 0
    %v270 = vsel %vm265, %v252, 0
    %272 = vmatprep.subr.mxu0 0.0
    %273 = vmatpush1.msra.mxu0 0.0
    %274 = vmatprep.subr.mxu0 0.0
    %275 = vmatpush1.msra.mxu0 0.0
    %276 = vmatprep.subr.mxu0 0.0
    %277 = vmatpush1.msra.mxu0 0.0
    %278 = vmatprep.subr.mxu0 0.0
    %279 = vmatpush1.msra.mxu0 0.0
    %280 = vmatprep.subr.mxu0 0.0
    %281 = vmatpush1.msra.mxu0 0.0
    %282 = vmatprep.subr.mxu0 0.0
    %283 = vmatpush1.msra.mxu0 0.0
    %284 = vmatprep.subr.mxu0 0.0
    %285 = vmatpush1.msra.mxu0 0.0
    %286 = vmatprep.subr.mxu0 0.0
    %287 = vmatpush1.msra.mxu0 0.0
    %288 = vmatprep.subr.mxu0 0.0
    %289 = vmatpush1.msra.mxu0 0.0
    %290 = vmatprep.subr.mxu0 0.0
    %291 = vmatpush1.msra.mxu0 0.0
    %292 = vmatprep.subr.mxu0 0.0
    %293 = vmatpush1.msra.mxu0 0.0
    %294 = vmatprep.subr.mxu0 0.0
    %295 = vmatpush1.msra.mxu0 0.0
    %296 = vmatprep.subr.mxu0 0.0
    %297 = vmatpush1.msra.mxu0 0.0
    %298 = vmatprep.subr.mxu0 0.0
    %299 = vmatpush1.msra.mxu0 0.0
    %300 = vmatprep.subr.mxu0 0.0
    %301 = vmatpush1.msra.mxu0 0.0
    %302 = vmatprep.subr.mxu0 0.0
    %303 = vmatpush1.msra.mxu0 %v39
    %304 = vmatprep.subr.mxu0 0.0
    %305 = vmatpush2.msra.mxu0 0.0
    %306 = vmatprep.subr.mxu0 0.0
    %307 = vmatpush2.msra.mxu0 0.0
    %308 = vmatprep.subr.mxu0 0.0
    %309 = vmatpush2.msra.mxu0 0.0
    %310 = vmatprep.subr.mxu0 0.0
    %311 = vmatpush2.msra.mxu0 0.0
    %312 = vmatprep.subr.mxu0 0.0
    %313 = vmatpush2.msra.mxu0 0.0
    %314 = vmatprep.subr.mxu0 0.0
    %315 = vmatpush2.msra.mxu0 0.0
    %316 = vmatprep.subr.mxu0 0.0
    %317 = vmatpush2.msra.mxu0 0.0
    %318 = vmatprep.subr.mxu0 0.0
    %319 = vmatpush2.msra.mxu0 0.0
    %320 = vmatprep.subr.mxu0 0.0
    %321 = vmatpush2.msra.mxu0 0.0
    %322 = vmatprep.subr.mxu0 0.0
    %323 = vmatpush2.msra.mxu0 0.0
    %324 = vmatprep.subr.mxu0 0.0
    %325 = vmatpush2.msra.mxu0 0.0
    %326 = vmatprep.subr.mxu0 0.0
    %327 = vmatpush2.msra.mxu0 0.0
    %328 = vmatprep.subr.mxu0 0.0
    %329 = vmatpush2.msra.mxu0 0.0
    %330 = vmatprep.subr.mxu0 0.0
    %331 = vmatpush2.msra.mxu0 0.0
    %332 = vmatprep.subr.mxu0 0.0
    %333 = vmatpush2.msra.mxu0 0.0
    %334 = vmatprep.subr.mxu0 0.0
    %335 = vmatpush2.msra.mxu0 0.0
    %336 = vmatprep.mubr.f32.mxu0 0.0
    %337 = vmatmul.mubr.f32.gmra.mxu0 %v267
    %v338 = vpop.f32.mrf.mxu0
    %v339 = vadd.f32 %v258, %v338
    %v340 = vpop.f32.mrf.mxu0
    %341 = vmatprep.mubr.f32.mxu0 0.0
    %342 = vmatmul.mubr.f32.gmra.mxu0 %v270
    %v343 = vpop.f32.mrf.mxu0
    %v344 = vadd.f32 %v263, %v343
    %v345 = vpop.f32.mrf.mxu0
    %346 = vdwg.mxu0
    %v347 = vadd.f32 %v249, %v339
    %v348 = vadd.f32 %v250, %v344
    %v349 = vmax.f32 %v347, 0.0
    %v350 = vmax.f32 %v348, 0.0
    %v351 = vld [vmem:[%s7] sm:$0xff]
    %v352 = vld [vmem:[%s7 + $0x8] sm:$0xff]
    %v353 = vld [vmem:[%s8] sm:$0xff]
    %v354 = vld [vmem:[%s8 + $0x8] sm:$0xff]
    %v355 = vld [vmem:[%s9] sm:$0xff]
    %v356 = vld [vmem:[%s9 + $0x8] sm:$0xff]
    %v357 = vld [vmem:[%s10] sm:$0xff]
    %v358 = vld [vmem:[%s10 + $0x8] sm:$0xff]
    %vm359 = vcmp.lt.s32.totalorder %v42, 2
    %360 = vrot.lane.b32.xlu0 %v349, 2
    %v361 = vpop.permute.xlu0 %360
    %362 = vrot.lane.b32.xlu0 %v350, 2
    %v363 = vpop.permute.xlu0 %362
    %v364 = vsel %vm359, 1, 0
    %vm365 = vcmp.eq.s32.totalorder %v364, 1
    %v366 = vsel %vm365, 0.0, %v361
    %v367 = vsel %vm365, 0.0, %v363
    %369 = vset.pattern.permute.xlu0 0
    %370 = vperm.xlu0 %369, %v353
    %v371 = vpop.permute.xlu0 %370
    %374 = vset.pattern.permute.xlu0 0
    %375 = vperm.xlu0 %374, %v354
    %v376 = vpop.permute.xlu0 %375
    %v379 = vsel %vm167, %v351, 0
    %v382 = vsel %vm167, %v352, 0
    %384 = vmatprep.subr.mxu0 0.0
    %385 = vmatpush1.msra.mxu0 0.0
    %386 = vmatprep.subr.mxu0 0.0
    %387 = vmatpush1.msra.mxu0 0.0
    %388 = vmatprep.subr.mxu0 0.0
    %389 = vmatpush1.msra.mxu0 0.0
    %390 = vmatprep.subr.mxu0 0.0
    %391 = vmatpush1.msra.mxu0 0.0
    %392 = vmatprep.subr.mxu0 0.0
    %393 = vmatpush1.msra.mxu0 0.0
    %394 = vmatprep.subr.mxu0 0.0
    %395 = vmatpush1.msra.mxu0 0.0
    %396 = vmatprep.subr.mxu0 0.0
    %397 = vmatpush1.msra.mxu0 0.0
    %398 = vmatprep.subr.mxu0 0.0
    %399 = vmatpush1.msra.mxu0 0.0
    %400 = vmatprep.subr.mxu0 0.0
    %401 = vmatpush1.msra.mxu0 0.0
    %402 = vmatprep.subr.mxu0 0.0
    %403 = vmatpush1.msra.mxu0 0.0
    %404 = vmatprep.subr.mxu0 0.0
    %405 = vmatpush1.msra.mxu0 0.0
    %406 = vmatprep.subr.mxu0 0.0
    %407 = vmatpush1.msra.mxu0 0.0
    %408 = vmatprep.subr.mxu0 0.0
    %409 = vmatpush1.msra.mxu0 %v350
    %410 = vmatprep.subr.mxu0 0.0
    %411 = vmatpush1.msra.mxu0 %v349
    %412 = vmatprep.subr.mxu0 0.0
    %413 = vmatpush1.msra.mxu0 %v367
    %414 = vmatprep.subr.mxu0 0.0
    %415 = vmatpush1.msra.mxu0 %v366
    %416 = vmatprep.subr.mxu0 0.0
    %417 = vmatpush2.msra.mxu0 0.0
    %418 = vmatprep.subr.mxu0 0.0
    %419 = vmatpush2.msra.mxu0 0.0
    %420 = vmatprep.subr.mxu0 0.0
    %421 = vmatpush2.msra.mxu0 0.0
    %422 = vmatprep.subr.mxu0 0.0
    %423 = vmatpush2.msra.mxu0 0.0
    %424 = vmatprep.subr.mxu0 0.0
    %425 = vmatpush2.msra.mxu0 0.0
    %426 = vmatprep.subr.mxu0 0.0
    %427 = vmatpush2.msra.mxu0 0.0
    %428 = vmatprep.subr.mxu0 0.0
    %429 = vmatpush2.msra.mxu0 0.0
    %430 = vmatprep.subr.mxu0 0.0
    %431 = vmatpush2.msra.mxu0 0.0
    %432 = vmatprep.subr.mxu0 0.0
    %433 = vmatpush2.msra.mxu0 0.0
    %434 = vmatprep.subr.mxu0 0.0
    %435 = vmatpush2.msra.mxu0 0.0
    %436 = vmatprep.subr.mxu0 0.0
    %437 = vmatpush2.msra.mxu0 0.0
    %438 = vmatprep.subr.mxu0 0.0
    %439 = vmatpush2.msra.mxu0 0.0
    %440 = vmatprep.subr.mxu0 0.0
    %441 = vmatpush2.msra.mxu0 0.0
    %442 = vmatprep.subr.mxu0 0.0
    %443 = vmatpush2.msra.mxu0 0.0
    %444 = vmatprep.subr.mxu0 0.0
    %445 = vmatpush2.msra.mxu0 0.0
    %446 = vmatprep.subr.mxu0 0.0
    %447 = vmatpush2.msra.mxu0 0.0
    %448 = vmatprep.mubr.f32.mxu0 0.0
    %449 = vmatmul.mubr.f32.gmra.mxu0 %v379
    %v450 = vpop.f32.mrf.mxu0
    %v451 = vadd.f32 %v371, %v450
    %v452 = vpop.f32.mrf.mxu0
    %453 = vmatprep.mubr.f32.mxu0 0.0
    %454 = vmatmul.mubr.f32.gmra.mxu0 %v382
    %v455 = vpop.f32.mrf.mxu0
    %v456 = vadd.f32 %v376, %v455
    %v457 = vpop.f32.mrf.mxu0
    %458 = vdwg.mxu0
    %v459 = vmax.f32 %v451, 0.0
    %v460 = vmax.f32 %v456, 0.0
    %461 = vrot.lane.b32.xlu0 %v459, 2
    %v462 = vpop.permute.xlu0 %461
    %463 = vrot.lane.b32.xlu0 %v460, 2
    %v464 = vpop.permute.xlu0 %463
    %v465 = vsel %vm365, 0.0, %v462
    %v466 = vsel %vm365, 0.0, %v464
    %468 = vset.pattern.permute.xlu0 0
    %469 = vperm.xlu0 %468, %v357
    %v470 = vpop.permute.xlu0 %469
    %473 = vset.pattern.permute.xlu0 0
    %474 = vperm.xlu0 %473, %v358
    %v475 = vpop.permute.xlu0 %474
    %v478 = vsel %vm167, %v355, 0
    %v481 = vsel %vm167, %v356, 0
    %483 = vmatprep.subr.mxu0 0.0
    %484 = vmatpush1.msra.mxu0 0.0
    %485 = vmatprep.subr.mxu0 0.0
    %486 = vmatpush1.msra.mxu0 0.0
    %487 = vmatprep.subr.mxu0 0.0
    %488 = vmatpush1.msra.mxu0 0.0
    %489 = vmatprep.subr.mxu0 0.0
    %490 = vmatpush1.msra.mxu0 0.0
    %491 = vmatprep.subr.mxu0 0.0
    %492 = vmatpush1.msra.mxu0 0.0
    %493 = vmatprep.subr.mxu0 0.0
    %494 = vmatpush1.msra.mxu0 0.0
    %495 = vmatprep.subr.mxu0 0.0
    %496 = vmatpush1.msra.mxu0 0.0
    %497 = vmatprep.subr.mxu0 0.0
    %498 = vmatpush1.msra.mxu0 0.0
    %499 = vmatprep.subr.mxu0 0.0
    %500 = vmatpush1.msra.mxu0 0.0
    %501 = vmatprep.subr.mxu0 0.0
    %502 = vmatpush1.msra.mxu0 0.0
    %503 = vmatprep.subr.mxu0 0.0
    %504 = vmatpush1.msra.mxu0 0.0
    %505 = vmatprep.subr.mxu0 0.0
    %506 = vmatpush1.msra.mxu0 0.0
    %507 = vmatprep.subr.mxu0 0.0
    %508 = vmatpush1.msra.mxu0 %v460
    %509 = vmatprep.subr.mxu0 0.0
    %510 = vmatpush1.msra.mxu0 %v459
    %511 = vmatprep.subr.mxu0 0.0
    %512 = vmatpush1.msra.mxu0 %v466
    %513 = vmatprep.subr.mxu0 0.0
    %514 = vmatpush1.msra.mxu0 %v465
    %515 = vmatprep.subr.mxu0 0.0
    %516 = vmatpush2.msra.mxu0 0.0
    %517 = vmatprep.subr.mxu0 0.0
    %518 = vmatpush2.msra.mxu0 0.0
    %519 = vmatprep.subr.mxu0 0.0
    %520 = vmatpush2.msra.mxu0 0.0
    %521 = vmatprep.subr.mxu0 0.0
    %522 = vmatpush2.msra.mxu0 0.0
    %523 = vmatprep.subr.mxu0 0.0
    %524 = vmatpush2.msra.mxu0 0.0
    %525 = vmatprep.subr.mxu0 0.0
    %526 = vmatpush2.msra.mxu0 0.0
    %527 = vmatprep.subr.mxu0 0.0
    %528 = vmatpush2.msra.mxu0 0.0
    %529 = vmatprep.subr.mxu0 0.0
    %530 = vmatpush2.msra.mxu0 0.0
    %531 = vmatprep.subr.mxu0 0.0
    %532 = vmatpush2.msra.mxu0 0.0
    %533 = vmatprep.subr.mxu0 0.0
    %534 = vmatpush2.msra.mxu0 0.0
    %535 = vmatprep.subr.mxu0 0.0
    %536 = vmatpush2.msra.mxu0 0.0
    %537 = vmatprep.subr.mxu0 0.0
    %538 = vmatpush2.msra.mxu0 0.0
    %539 = vmatprep.subr.mxu0 0.0
    %540 = vmatpush2.msra.mxu0 0.0
    %541 = vmatprep.subr.mxu0 0.0
    %542 = vmatpush2.msra.mxu0 0.0
    %543 = vmatprep.subr.mxu0 0.0
    %544 = vmatpush2.msra.mxu0 0.0
    %545 = vmatprep.subr.mxu0 0.0
    %546 = vmatpush2.msra.mxu0 0.0
    %547 = vmatprep.mubr.f32.mxu0 0.0
    %548 = vmatmul.mubr.f32.gmra.mxu0 %v478
    %v549 = vpop.f32.mrf.mxu0
    %v550 = vadd.f32 %v470, %v549
    %v551 = vpop.f32.mrf.mxu0
    %552 = vmatprep.mubr.f32.mxu0 0.0
    %553 = vmatmul.mubr.f32.gmra.mxu0 %v481
    %v554 = vpop.f32.mrf.mxu0
    %v555 = vadd.f32 %v475, %v554
    %v556 = vpop.f32.mrf.mxu0
    %557 = vdwg.mxu0
    %v558 = vmax.f32 %v550, 0.0
    %v559 = vmax.f32 %v555, 0.0
    %v560 = vadd.f32 %v558, %v349
    %v561 = vadd.f32 %v559, %v350
    %v562 = vmax.f32 %v560, 0.0
    %v563 = vmax.f32 %v561, 0.0
    %564 = vst [vmem:[#allocation2] sm:$0xff] %v562
    %565 = vst [vmem:[#allocation2 + $0x8] sm:$0xff] %v563
    // Predicated region
    $region46: #{tpu_custom_call.1} parent=1 // pred_check
      _
    $region47: #{tpu_custom_call.1} parent=1 // pred_check_branch
      %567 = sbr.rel (0) target = $region49
    $region48: #{tpu_custom_call.1} parent=1 // pred_region
      %s569 = ssub.s32 256, 256
      %570 = vsyncadd [#allocation3], %s569
      %s571 = sshll.u32 [#allocation2], 4
      %s572 = int_to_ptr.vmem [resolvable:$true] %s571
      %577 = dma.vmem_to_hbm [thread:$0]  %s572, 256, %s11, [#allocation3], 128, 128, 8
    $region49: #{tpu_custom_call.1} parent=1 // pred_fallthru
      _
    // Predicated region
    $region50: #{tpu_custom_call.1} parent=1 // pred_check
      _
    $region51: #{tpu_custom_call.1} parent=1 // pred_check_branch
      %579 = sbr.rel (0) target = $region53
    $region52: #{tpu_custom_call.1} parent=1 // pred_region
      %580 = dma.done [#allocation3], 256
    $region53: #{tpu_custom_call.1} parent=1 // pred_fallthru
      _
    %581 = vsyncpa [#allocation3], 1

</llo_original>
